<compile_context>
chip_gen: v5e
topology: v5e:2x2
jax: 0.10.0
libtpu: 0.0.40
codegen_flags: <defaults>
</compile_context>

<pallas_src>
import numpy as np
import jax
import jax.numpy as jnp
from jax.experimental import pallas as pl
from jax.experimental.pallas import tpu as pltpu  # noqa: F401  (TPU backend)

# ---- scaled-down hyper-parameters (same structure as the PyTorch module) ----
B   = 2              # batch
MF  = 8              # mel_freq                       (original 128)
TST = 128            # time_steps                     (original 2048)
TS  = TST // 4       # time per reshaped clip = 32    (original 512)
MR  = TS - 4         # melresnet_dim = 28             (original 508)
SA  = 32             # seq_len                        (original 256)
Q   = SA // 4        # time_mlp output dim = 8        (original 64)
DM  = 64             # model_dimension                (original 512)

BN_EPS = 1e-5


# ============================ in-kernel helpers ============================

def _dot(x, w_ref, b_ref):
    """x @ W + b with f32 MXU accumulation; b is a (1, N) row vector."""
    return jnp.dot(x, w_ref[...], preferred_element_type=jnp.float32) + b_ref[...]


# ============================ fused kernels ============================

def _time_kernel(a_ref, mel_w, mel_b, t1_w, t1_b, bn_g, bn_b, t2_w, t2_b, o_ref):
    """MelResNet substitute + time_mlp, fully fused.
    rows = flattened leading axes of PyTorch's a.reshape(4*B, mel_freq, -1),
    lanes = time features.  BatchNorm1d(mel_freq) in eval mode is a per-row affine
    (bn_g / bn_b are (rows, 1) column vectors)."""
    # TODO(synk): MelResNet() is not defined in the provided source; a learned linear
    # projection along the time axis (TS -> TS-4 = melresnet_dim) stands in for it.
    x = _dot(a_ref[...], mel_w, mel_b)          # (4B*MF, MR)
    x = _dot(x, t1_w, t1_b)                     # Linear(melresnet_dim -> seq_len)
    x = x * bn_g[...] + bn_b[...]               # BatchNorm1d(mel_freq), eval affine
    o_ref[...] = _dot(x, t2_w, t2_b)            # Linear(seq_len -> seq_len // 4)


def _freq_kernel(y_ref, f1_w, f1_b, bn_g, bn_b, f2_w, f2_b, o_ref):
    """freq_mlp, fully fused.  rows = (batch, seq position), lanes = model features.
    BatchNorm1d(seq_len) in eval mode is a per-row affine."""
    x = _dot(y_ref[...], f1_w, f1_b)            # Linear(mel_freq -> model_dim // 2)
    x = x * bn_g[...] + bn_b[...]               # BatchNorm1d(seq_len), eval affine
    o_ref[...] = _dot(x, f2_w, f2_b)            # Linear(model_dim // 2 -> model_dim)


# ============================ forward (2 pallas_calls) ============================

@jax.jit
def audio_feature_forward(p, a):
    bsz = a.shape[0]
    # PyTorch: a = a.reshape((4 * B, mel_freq, -1)); merge the leading axes onto rows.
    a2d = a.reshape(4 * bsz * MF, TS)

    front = pl.pallas_call(
        _time_kernel,
        out_shape=jax.ShapeDtypeStruct((4 * bsz * MF, Q), jnp.float32),
    )(a2d, p['mel_w'], p['mel_b'], p['t1_w'], p['t1_b'],
      p['bn_t_g'], p['bn_t_b'], p['t2_w'], p['t2_b'])

    # PyTorch: a = a.reshape(-1, mel_freq, seq_len).permute(0, 2, 1)
    # A ~2 KiB row-major shuffle; done as XLA glue so the kernels stay relayout-free.
    y = front.reshape(bsz, MF, SA).transpose(0, 2, 1).reshape(bsz * SA, MF)

    enc = pl.pallas_call(
        _freq_kernel,
        out_shape=jax.ShapeDtypeStruct((bsz * SA, DM), jnp.float32),
    )(y, p['f1_w'], p['f1_b'], p['bn_f_g'], p['bn_f_b'], p['f2_w'], p['f2_b'])

    return enc.reshape(bsz, SA, DM)             # audio_encoded: (B, seq_len, model_dim)


# ============================ parameter init ============================

def _linear_init(key, fan_in, fan_out):
    kw, kb = jax.random.split(key)
    w = jax.random.normal(kw, (fan_in, fan_out), jnp.float32) / np.sqrt(fan_in)
    b = 0.02 * jax.random.normal(kb, (1, fan_out), jnp.float32)
    return w, b


def _bn_rows_init(key, n_ch, outer):
    """Eval-mode BatchNorm1d whose channel axis maps to rows of the 2-D layout:
    gamma_eff = gamma / sqrt(running_var + eps), beta_eff = beta - mean * gamma_eff
    (running stats at init: mean = 0, var = 1).  Returned as (outer*n_ch, 1) columns
    so the kernel applies it as a broadcasted per-row affine."""
    kg, kb = jax.random.split(key)
    g = (1.0 + 0.1 * jax.random.normal(kg, (n_ch, 1), jnp.float32)) / np.sqrt(1.0 + BN_EPS)
    b = 0.05 * jax.random.normal(kb, (n_ch, 1), jnp.float32)
    return jnp.tile(g, (outer, 1)), jnp.tile(b, (outer, 1))


def init_params(key):
    ks = jax.random.split(key, 7)
    p = {}
    p['mel_w'], p['mel_b'] = _linear_init(ks[0], TS, MR)        # MelResNet substitute
    p['t1_w'],  p['t1_b']  = _linear_init(ks[1], MR, SA)        # time_mlp[0]
    p['bn_t_g'], p['bn_t_b'] = _bn_rows_init(ks[2], MF, 4 * B)  # time_mlp[1] BatchNorm1d(mel_freq)
    p['t2_w'],  p['t2_b']  = _linear_init(ks[3], SA, Q)         # time_mlp[2]
    p['f1_w'],  p['f1_b']  = _linear_init(ks[4], MF, DM // 2)   # freq_mlp[0]
    p['bn_f_g'], p['bn_f_b'] = _bn_rows_init(ks[5], SA, B)      # freq_mlp[1] BatchNorm1d(seq_len)
    p['f2_w'],  p['f2_b']  = _linear_init(ks[6], DM // 2, DM)   # freq_mlp[2]
    return p


# ============================ main ============================

if __name__ == "__main__":
    root = jax.random.PRNGKey(0)
    k_in, k_par = jax.random.split(root)

    a = jax.random.normal(k_in, (B, MF, TST), jnp.float32)      # (2, 8, 128)
    params = init_params(k_par)

    out = audio_feature_forward(params, a)
    jax.block_until_ready(out)

    assert out.shape == (B, SA, DM), out.shape
    assert bool(jnp.all(jnp.isfinite(out)))
    print("KERNEL_OK")
</pallas_src>

<mosaic_0001>
module attributes {stable_mosaic.version = 11 : i64} {
  func.func @_time_kernel(%arg0: memref<64x32xf32, #tpu.memory_space<vmem>>, %arg1: memref<32x28xf32, #tpu.memory_space<vmem>>, %arg2: memref<1x28xf32, #tpu.memory_space<vmem>>, %arg3: memref<28x32xf32, #tpu.memory_space<vmem>>, %arg4: memref<1x32xf32, #tpu.memory_space<vmem>>, %arg5: memref<64x1xf32, #tpu.memory_space<vmem>>, %arg6: memref<64x1xf32, #tpu.memory_space<vmem>>, %arg7: memref<32x8xf32, #tpu.memory_space<vmem>>, %arg8: memref<1x8xf32, #tpu.memory_space<vmem>>, %arg9: memref<64x8xf32, #tpu.memory_space<vmem>>) attributes {dimension_semantics = [], scalar_prefetch = 0 : i64, scratch_operands = 0 : i64, tpu.core_type = #tpu.core_type<tc>} {
    %c0 = arith.constant 0 : index
    %c0_0 = arith.constant 0 : index
    %0 = vector.load %arg0[%c0, %c0_0] : memref<64x32xf32, #tpu.memory_space<vmem>>, vector<64x32xf32>
    %c0_1 = arith.constant 0 : index
    %c0_2 = arith.constant 0 : index
    %1 = vector.load %arg1[%c0_1, %c0_2] : memref<32x28xf32, #tpu.memory_space<vmem>>, vector<32x28xf32>
    %cst = arith.constant dense<0.000000e+00> : vector<64x28xf32>
    %2 = tpu.matmul %0, %1, %cst {dimension_numbers = #tpu.dot_dimension_numbers<[1], [0], [0], [1], [0, 0, 1, 1], [], []>} : vector<64x32xf32>, vector<32x28xf32>, vector<64x28xf32> -> vector<64x28xf32>
    %c0_3 = arith.constant 0 : index
    %c0_4 = arith.constant 0 : index
    %3 = vector.load %arg2[%c0_3, %c0_4] : memref<1x28xf32, #tpu.memory_space<vmem>>, vector<1x28xf32>
    %4 = vector.broadcast %3 : vector<1x28xf32> to vector<64x28xf32>
    %5 = arith.addf %2, %4 : vector<64x28xf32>
    %c0_5 = arith.constant 0 : index
    %c0_6 = arith.constant 0 : index
    %6 = vector.load %arg3[%c0_5, %c0_6] : memref<28x32xf32, #tpu.memory_space<vmem>>, vector<28x32xf32>
    %cst_7 = arith.constant dense<0.000000e+00> : vector<64x32xf32>
    %7 = tpu.matmul %5, %6, %cst_7 {dimension_numbers = #tpu.dot_dimension_numbers<[1], [0], [0], [1], [0, 0, 1, 1], [], []>} : vector<64x28xf32>, vector<28x32xf32>, vector<64x32xf32> -> vector<64x32xf32>
    %c0_8 = arith.constant 0 : index
    %c0_9 = arith.constant 0 : index
    %8 = vector.load %arg4[%c0_8, %c0_9] : memref<1x32xf32, #tpu.memory_space<vmem>>, vector<1x32xf32>
    %9 = vector.broadcast %8 : vector<1x32xf32> to vector<64x32xf32>
    %10 = arith.addf %7, %9 : vector<64x32xf32>
    %c0_10 = arith.constant 0 : index
    %c0_11 = arith.constant 0 : index
    %11 = vector.load %arg5[%c0_10, %c0_11] : memref<64x1xf32, #tpu.memory_space<vmem>>, vector<64x1xf32>
    %12 = vector.broadcast %11 : vector<64x1xf32> to vector<64x32xf32>
    %13 = arith.mulf %10, %12 : vector<64x32xf32>
    %c0_12 = arith.constant 0 : index
    %c0_13 = arith.constant 0 : index
    %14 = vector.load %arg6[%c0_12, %c0_13] : memref<64x1xf32, #tpu.memory_space<vmem>>, vector<64x1xf32>
    %15 = vector.broadcast %14 : vector<64x1xf32> to vector<64x32xf32>
    %16 = arith.addf %13, %15 : vector<64x32xf32>
    %c0_14 = arith.constant 0 : index
    %c0_15 = arith.constant 0 : index
    %17 = vector.load %arg7[%c0_14, %c0_15] : memref<32x8xf32, #tpu.memory_space<vmem>>, vector<32x8xf32>
    %cst_16 = arith.constant dense<0.000000e+00> : vector<64x8xf32>
    %18 = tpu.matmul %16, %17, %cst_16 {dimension_numbers = #tpu.dot_dimension_numbers<[1], [0], [0], [1], [0, 0, 1, 1], [], []>} : vector<64x32xf32>, vector<32x8xf32>, vector<64x8xf32> -> vector<64x8xf32>
    %c0_17 = arith.constant 0 : index
    %c0_18 = arith.constant 0 : index
    %19 = vector.load %arg8[%c0_17, %c0_18] : memref<1x8xf32, #tpu.memory_space<vmem>>, vector<1x8xf32>
    %20 = vector.broadcast %19 : vector<1x8xf32> to vector<64x8xf32>
    %21 = arith.addf %18, %20 : vector<64x8xf32>
    %c0_19 = arith.constant 0 : index
    %c0_20 = arith.constant 0 : index
    %22 = vector.load %arg9[%c0_19, %c0_20] : memref<64x8xf32, #tpu.memory_space<vmem>>, vector<64x8xf32>
    tpu.vector_store %arg9[%c0_19, %c0_20], %21 {strides = array<i32>} : memref<64x8xf32, #tpu.memory_space<vmem>>, vector<64x8xf32>,
    return
  }
}

module attributes {stable_mosaic.version = 11 : i64} {
  func.func @_freq_kernel(%arg0: memref<64x8xf32, #tpu.memory_space<vmem>>, %arg1: memref<8x32xf32, #tpu.memory_space<vmem>>, %arg2: memref<1x32xf32, #tpu.memory_space<vmem>>, %arg3: memref<64x1xf32, #tpu.memory_space<vmem>>, %arg4: memref<64x1xf32, #tpu.memory_space<vmem>>, %arg5: memref<32x64xf32, #tpu.memory_space<vmem>>, %arg6: memref<1x64xf32, #tpu.memory_space<vmem>>, %arg7: memref<64x64xf32, #tpu.memory_space<vmem>>) attributes {dimension_semantics = [], scalar_prefetch = 0 : i64, scratch_operands = 0 : i64, tpu.core_type = #tpu.core_type<tc>} {
    %c0 = arith.constant 0 : index
    %c0_0 = arith.constant 0 : index
    %0 = vector.load %arg0[%c0, %c0_0] : memref<64x8xf32, #tpu.memory_space<vmem>>, vector<64x8xf32>
    %c0_1 = arith.constant 0 : index
    %c0_2 = arith.constant 0 : index
    %1 = vector.load %arg1[%c0_1, %c0_2] : memref<8x32xf32, #tpu.memory_space<vmem>>, vector<8x32xf32>
    %cst = arith.constant dense<0.000000e+00> : vector<64x32xf32>
    %2 = tpu.matmul %0, %1, %cst {dimension_numbers = #tpu.dot_dimension_numbers<[1], [0], [0], [1], [0, 0, 1, 1], [], []>} : vector<64x8xf32>, vector<8x32xf32>, vector<64x32xf32> -> vector<64x32xf32>
    %c0_3 = arith.constant 0 : index
    %c0_4 = arith.constant 0 : index
    %3 = vector.load %arg2[%c0_3, %c0_4] : memref<1x32xf32, #tpu.memory_space<vmem>>, vector<1x32xf32>
    %4 = vector.broadcast %3 : vector<1x32xf32> to vector<64x32xf32>
    %5 = arith.addf %2, %4 : vector<64x32xf32>
    %c0_5 = arith.constant 0 : index
    %c0_6 = arith.constant 0 : index
    %6 = vector.load %arg3[%c0_5, %c0_6] : memref<64x1xf32, #tpu.memory_space<vmem>>, vector<64x1xf32>
    %7 = vector.broadcast %6 : vector<64x1xf32> to vector<64x32xf32>
    %8 = arith.mulf %5, %7 : vector<64x32xf32>
    %c0_7 = arith.constant 0 : index
    %c0_8 = arith.constant 0 : index
    %9 = vector.load %arg4[%c0_7, %c0_8] : memref<64x1xf32, #tpu.memory_space<vmem>>, vector<64x1xf32>
    %10 = vector.broadcast %9 : vector<64x1xf32> to vector<64x32xf32>
    %11 = arith.addf %8, %10 : vector<64x32xf32>
    %c0_9 = arith.constant 0 : index
    %c0_10 = arith.constant 0 : index
    %12 = vector.load %arg5[%c0_9, %c0_10] : memref<32x64xf32, #tpu.memory_space<vmem>>, vector<32x64xf32>
    %cst_11 = arith.constant dense<0.000000e+00> : vector<64x64xf32>
    %13 = tpu.matmul %11, %12, %cst_11 {dimension_numbers = #tpu.dot_dimension_numbers<[1], [0], [0], [1], [0, 0, 1, 1], [], []>} : vector<64x32xf32>, vector<32x64xf32>, vector<64x64xf32> -> vector<64x64xf32>
    %c0_12 = arith.constant 0 : index
    %c0_13 = arith.constant 0 : index
    %14 = vector.load %arg6[%c0_12, %c0_13] : memref<1x64xf32, #tpu.memory_space<vmem>>, vector<1x64xf32>
    %15 = vector.broadcast %14 : vector<1x64xf32> to vector<64x64xf32>
    %16 = arith.addf %13, %15 : vector<64x64xf32>
    %c0_14 = arith.constant 0 : index
    %c0_15 = arith.constant 0 : index
    %17 = vector.load %arg7[%c0_14, %c0_15] : memref<64x64xf32, #tpu.memory_space<vmem>>, vector<64x64xf32>
    tpu.vector_store %arg7[%c0_14, %c0_15], %16 {strides = array<i32>} : memref<64x64xf32, #tpu.memory_space<vmem>>, vector<64x64xf32>,
    return
  }
}

</mosaic_0001>

<llo_original>
// kernel: audio_feature_forward.2
$region0: #{audio_feature_forward.2}
  #allocation0 [shape = 'u32[]', space=smem, size = 0x4, offset = 0x4, fixed_abs, tag = 'smem constant byte address 0x4 - core index']
  #allocation1 [shape = 'u32[72,128]{1,0:T(1,128)}', space=vmem, size = 0x9000, scoped, tag = 'internal scratch']
  %s0 = inlined_call_operand.vmem [shape: f32[64,32], index: 0, kind: input, shape index: {}]
  %s1 = inlined_call_operand.vmem [shape: f32[32,28], index: 1, kind: input, shape index: {}]
  %s2 = inlined_call_operand.vmem [shape: f32[1,28], index: 2, kind: input, shape index: {}]
  %s3 = inlined_call_operand.vmem [shape: f32[28,32], index: 3, kind: input, shape index: {}]
  %s4 = inlined_call_operand.vmem [shape: f32[1,32], index: 4, kind: input, shape index: {}]
  %s5 = inlined_call_operand.vmem [shape: f32[64,1], index: 5, kind: input, shape index: {}]
  %s6 = inlined_call_operand.vmem [shape: f32[64,1], index: 6, kind: input, shape index: {}]
  %s7 = inlined_call_operand.vmem [shape: f32[32,8], index: 7, kind: input, shape index: {}]
  %s8 = inlined_call_operand.vmem [shape: f32[1,8], index: 8, kind: input, shape index: {}]
  %s9 = inlined_call_operand.vmem [shape: f32[64,8], index: 9, kind: output, shape index: {}]
  %s10 = sld [smem:[#allocation0]]
  $region46: #{audio_feature_forward.2} parent=0
    _
  %s12 = ssub.s32 1, %s10
  %s13 = scalar_select 0, %s12, %s10
  // Predicated region
  $region2: #{audio_feature_forward.2} parent=0 // pred_check
    _
  $region3: #{audio_feature_forward.2} parent=0 // pred_check_branch
    %15 = sbr.rel (0) target = $region5
  $region4: #{audio_feature_forward.2} parent=0 // pred_region
    _
  $region5: #{audio_feature_forward.2} parent=0 // pred_fallthru
    _
  // Predicated region
  $region6: #{audio_feature_forward.2} parent=0 // pred_check
    _
  $region7: #{audio_feature_forward.2} parent=0 // pred_check_branch
    %17 = sbr.rel (0) target = $region9
  $region8: #{audio_feature_forward.2} parent=0 // pred_region
    _
  $region9: #{audio_feature_forward.2} parent=0 // pred_fallthru
    _
  // Predicated region
  $region10: #{audio_feature_forward.2} parent=0 // pred_check
    _
  $region11: #{audio_feature_forward.2} parent=0 // pred_check_branch
    %19 = sbr.rel (0) target = $region13
  $region12: #{audio_feature_forward.2} parent=0 // pred_region
    _
  $region13: #{audio_feature_forward.2} parent=0 // pred_fallthru
    _
  // Predicated region
  $region14: #{audio_feature_forward.2} parent=0 // pred_check
    _
  $region15: #{audio_feature_forward.2} parent=0 // pred_check_branch
    %21 = sbr.rel (0) target = $region17
  $region16: #{audio_feature_forward.2} parent=0 // pred_region
    _
  $region17: #{audio_feature_forward.2} parent=0 // pred_fallthru
    _
  // Predicated region
  $region18: #{audio_feature_forward.2} parent=0 // pred_check
    _
  $region19: #{audio_feature_forward.2} parent=0 // pred_check_branch
    %23 = sbr.rel (0) target = $region21
  $region20: #{audio_feature_forward.2} parent=0 // pred_region
    _
  $region21: #{audio_feature_forward.2} parent=0 // pred_fallthru
    _
  // Predicated region
  $region22: #{audio_feature_forward.2} parent=0 // pred_check
    _
  $region23: #{audio_feature_forward.2} parent=0 // pred_check_branch
    %25 = sbr.rel (0) target = $region25
  $region24: #{audio_feature_forward.2} parent=0 // pred_region
    _
  $region25: #{audio_feature_forward.2} parent=0 // pred_fallthru
    _
  // Predicated region
  $region26: #{audio_feature_forward.2} parent=0 // pred_check
    _
  $region27: #{audio_feature_forward.2} parent=0 // pred_check_branch
    %27 = sbr.rel (0) target = $region29
  $region28: #{audio_feature_forward.2} parent=0 // pred_region
    _
  $region29: #{audio_feature_forward.2} parent=0 // pred_fallthru
    _
  // Predicated region
  $region30: #{audio_feature_forward.2} parent=0 // pred_check
    _
  $region31: #{audio_feature_forward.2} parent=0 // pred_check_branch
    %29 = sbr.rel (0) target = $region33
  $region32: #{audio_feature_forward.2} parent=0 // pred_region
    _
  $region33: #{audio_feature_forward.2} parent=0 // pred_fallthru
    _
  // Predicated region
  $region34: #{audio_feature_forward.2} parent=0 // pred_check
    _
  $region35: #{audio_feature_forward.2} parent=0 // pred_check_branch
    %31 = sbr.rel (0) target = $region37
  $region36: #{audio_feature_forward.2} parent=0 // pred_region
    _
  $region37: #{audio_feature_forward.2} parent=0 // pred_fallthru
    _
  %v32 = vld [vmem:[%s0] sm:$0xff]
  %v33 = vld [vmem:[%s0 + $0x8] sm:$0xff]
  %v34 = vld [vmem:[%s0 + $0x10] sm:$0xff]
  %v35 = vld [vmem:[%s0 + $0x18] sm:$0xff]
  %v36 = vld [vmem:[%s0 + $0x20] sm:$0xff]
  %v37 = vld [vmem:[%s0 + $0x28] sm:$0xff]
  %v38 = vld [vmem:[%s0 + $0x30] sm:$0xff]
  %v39 = vld [vmem:[%s0 + $0x38] sm:$0xff]
  %v40 = vld [vmem:[%s1] sm:$0xff]
  %v41 = vld [vmem:[%s1 + $0x8] sm:$0xff]
  %v42 = vld [vmem:[%s1 + $0x10] sm:$0xff]
  %v43 = vld [vmem:[%s1 + $0x18] sm:$0xff]
  %v44 = vld [vmem:[%s2] sm:$0x1]
  %v46 = vperm.slane %v44, 0
  %vm48 = vcmask 261120
  %v50 = vsel %vm48, %v32, 0
  %v53 = vsel %vm48, %v33, 0
  %v56 = vsel %vm48, %v34, 0
  %v59 = vsel %vm48, %v35, 0
  %v62 = vsel %vm48, %v36, 0
  %v65 = vsel %vm48, %v37, 0
  %v68 = vsel %vm48, %v38, 0
  %v71 = vsel %vm48, %v39, 0
  %73 = vmatpush.msra.mxu0 0.0
  %74 = vmatpush.msra.mxu0 0.0
  %75 = vmatpush.msra.mxu0 0.0
  %76 = vmatpush.msra.mxu0 0.0
  %77 = vmatpush.msra.mxu0 0.0
  %78 = vmatpush.msra.mxu0 0.0
  %79 = vmatpush.msra.mxu0 0.0
  %80 = vmatpush.msra.mxu0 0.0
  %81 = vmatpush.msra.mxu0 0.0
  %82 = vmatpush.msra.mxu0 0.0
  %83 = vmatpush.msra.mxu0 0.0
  %84 = vmatpush.msra.mxu0 0.0
  %85 = vmatpush.msra.mxu0 %v43
  %86 = vmatpush.msra.mxu0 %v42
  %87 = vmatpush.msra.mxu0 %v41
  %88 = vmatpush.msra.mxu0 %v40
  %89 = vmatmul.f32.gmra.mxu0 %v50
  %v90 = vpop.f32.mrf.mxu0
  %v91 = vadd.f32 %v46, %v90
  %92 = vmatmul.f32.gmra.mxu0 %v53
  %v93 = vpop.f32.mrf.mxu0
  %v94 = vadd.f32 %v46, %v93
  %95 = vmatmul.f32.gmra.mxu0 %v56
  %v96 = vpop.f32.mrf.mxu0
  %v97 = vadd.f32 %v46, %v96
  %98 = vmatmul.f32.gmra.mxu0 %v59
  %v99 = vpop.f32.mrf.mxu0
  %v100 = vadd.f32 %v46, %v99
  %101 = vmatmul.f32.gmra.mxu0 %v62
  %v102 = vpop.f32.mrf.mxu0
  %v103 = vadd.f32 %v46, %v102
  %104 = vmatmul.f32.gmra.mxu0 %v65
  %v105 = vpop.f32.mrf.mxu0
  %v106 = vadd.f32 %v46, %v105
  %107 = vmatmul.f32.gmra.mxu0 %v68
  %v108 = vpop.f32.mrf.mxu0
  %v109 = vadd.f32 %v46, %v108
  %110 = vmatmul.f32.gmra.mxu0 %v71
  %v111 = vpop.f32.mrf.mxu0
  %v112 = vadd.f32 %v46, %v111
  %113 = vdwg.mxu0
  %v114 = vld [vmem:[%s3] sm:$0xff]
  %v115 = vld [vmem:[%s3 + $0x8] sm:$0xff]
  %v116 = vld [vmem:[%s3 + $0x10] sm:$0xff]
  %v117 = vld [vmem:[%s3 + $0x18] sm:$0xf]
  %v118 = vld [vmem:[%s4] sm:$0x1]
  %v120 = vperm.slane %v118, 0
  %vm122 = vcmask 228352
  %v124 = vsel %vm122, %v91, 0
  %v127 = vsel %vm122, %v94, 0
  %v130 = vsel %vm122, %v97, 0
  %v133 = vsel %vm122, %v100, 0
  %v136 = vsel %vm122, %v103, 0
  %v139 = vsel %vm122, %v106, 0
  %v142 = vsel %vm122, %v109, 0
  %v145 = vsel %vm122, %v112, 0
  %vm147 = vcmask 1043456
  %v149 = vsel %vm147, %v117, 0
  %151 = vmatpush.msra.mxu0 0.0
  %152 = vmatpush.msra.mxu0 0.0
  %153 = vmatpush.msra.mxu0 0.0
  %154 = vmatpush.msra.mxu0 0.0
  %155 = vmatpush.msra.mxu0 0.0
  %156 = vmatpush.msra.mxu0 0.0
  %157 = vmatpush.msra.mxu0 0.0
  %158 = vmatpush.msra.mxu0 0.0
  %159 = vmatpush.msra.mxu0 0.0
  %160 = vmatpush.msra.mxu0 0.0
  %161 = vmatpush.msra.mxu0 0.0
  %162 = vmatpush.msra.mxu0 0.0
  %163 = vmatpush.msra.mxu0 %v149
  %164 = vmatpush.msra.mxu0 %v116
  %165 = vmatpush.msra.mxu0 %v115
  %166 = vmatpush.msra.mxu0 %v114
  %167 = vmatmul.f32.gmra.mxu0 %v124
  %v168 = vpop.f32.mrf.mxu0
  %v169 = vadd.f32 %v120, %v168
  %170 = vmatmul.f32.gmra.mxu0 %v127
  %v171 = vpop.f32.mrf.mxu0
  %v172 = vadd.f32 %v120, %v171
  %173 = vmatmul.f32.gmra.mxu0 %v130
  %v174 = vpop.f32.mrf.mxu0
  %v175 = vadd.f32 %v120, %v174
  %176 = vmatmul.f32.gmra.mxu0 %v133
  %v177 = vpop.f32.mrf.mxu0
  %v178 = vadd.f32 %v120, %v177
  %179 = vmatmul.f32.gmra.mxu0 %v136
  %v180 = vpop.f32.mrf.mxu0
  %v181 = vadd.f32 %v120, %v180
  %182 = vmatmul.f32.gmra.mxu0 %v139
  %v183 = vpop.f32.mrf.mxu0
  %v184 = vadd.f32 %v120, %v183
  %185 = vmatmul.f32.gmra.mxu0 %v142
  %v186 = vpop.f32.mrf.mxu0
  %v187 = vadd.f32 %v120, %v186
  %188 = vmatmul.f32.gmra.mxu0 %v145
  %v189 = vpop.f32.mrf.mxu0
  %v190 = vadd.f32 %v120, %v189
  %191 = vdwg.mxu0
  %v192 = vld [vmem:[%s5] sm:$0xff]
  %v193 = vld [vmem:[%s5 + $0x8] sm:$0xff]
  %v194 = vld [vmem:[%s5 + $0x10] sm:$0xff]
  %v195 = vld [vmem:[%s5 + $0x18] sm:$0xff]
  %v196 = vld [vmem:[%s5 + $0x20] sm:$0xff]
  %v197 = vld [vmem:[%s5 + $0x28] sm:$0xff]
  %v198 = vld [vmem:[%s5 + $0x30] sm:$0xff]
  %v199 = vld [vmem:[%s5 + $0x38] sm:$0xff]
  %201 = vset.pattern.permute.xlu0 0
  %202 = vperm.xlu0 %201, %v192
  %v203 = vpop.permute.xlu0 %202
  %206 = vset.pattern.permute.xlu0 0
  %207 = vperm.xlu0 %206, %v193
  %v208 = vpop.permute.xlu0 %207
  %211 = vset.pattern.permute.xlu0 0
  %212 = vperm.xlu0 %211, %v194
  %v213 = vpop.permute.xlu0 %212
  %216 = vset.pattern.permute.xlu0 0
  %217 = vperm.xlu0 %216, %v195
  %v218 = vpop.permute.xlu0 %217
  %221 = vset.pattern.permute.xlu0 0
  %222 = vperm.xlu0 %221, %v196
  %v223 = vpop.permute.xlu0 %222
  %226 = vset.pattern.permute.xlu0 0
  %227 = vperm.xlu0 %226, %v197
  %v228 = vpop.permute.xlu0 %227
  %231 = vset.pattern.permute.xlu0 0
  %232 = vperm.xlu0 %231, %v198
  %v233 = vpop.permute.xlu0 %232
  %236 = vset.pattern.permute.xlu0 0
  %237 = vperm.xlu0 %236, %v199
  %v238 = vpop.permute.xlu0 %237
  %v240 = vmul.f32 %v169, %v203
  %v241 = vmul.f32 %v172, %v208
  %v242 = vmul.f32 %v175, %v213
  %v243 = vmul.f32 %v178, %v218
  %v244 = vmul.f32 %v181, %v223
  %v245 = vmul.f32 %v184, %v228
  %v246 = vmul.f32 %v187, %v233
  %v247 = vmul.f32 %v190, %v238
  %v248 = vld [vmem:[%s6] sm:$0xff]
  %v249 = vld [vmem:[%s6 + $0x8] sm:$0xff]
  %v250 = vld [vmem:[%s6 + $0x10] sm:$0xff]
  %v251 = vld [vmem:[%s6 + $0x18] sm:$0xff]
  %v252 = vld [vmem:[%s6 + $0x20] sm:$0xff]
  %v253 = vld [vmem:[%s6 + $0x28] sm:$0xff]
  %v254 = vld [vmem:[%s6 + $0x30] sm:$0xff]
  %v255 = vld [vmem:[%s6 + $0x38] sm:$0xff]
  %257 = vset.pattern.permute.xlu0 0
  %258 = vperm.xlu0 %257, %v248
  %v259 = vpop.permute.xlu0 %258
  %262 = vset.pattern.permute.xlu0 0
  %263 = vperm.xlu0 %262, %v249
  %v264 = vpop.permute.xlu0 %263
  %267 = vset.pattern.permute.xlu0 0
  %268 = vperm.xlu0 %267, %v250
  %v269 = vpop.permute.xlu0 %268
  %272 = vset.pattern.permute.xlu0 0
  %273 = vperm.xlu0 %272, %v251
  %v274 = vpop.permute.xlu0 %273
  %277 = vset.pattern.permute.xlu0 0
  %278 = vperm.xlu0 %277, %v252
  %v279 = vpop.permute.xlu0 %278
  %282 = vset.pattern.permute.xlu0 0
  %283 = vperm.xlu0 %282, %v253
  %v284 = vpop.permute.xlu0 %283
  %287 = vset.pattern.permute.xlu0 0
  %288 = vperm.xlu0 %287, %v254
  %v289 = vpop.permute.xlu0 %288
  %292 = vset.pattern.permute.xlu0 0
  %293 = vperm.xlu0 %292, %v255
  %v294 = vpop.permute.xlu0 %293
  %v296 = vadd.f32 %v240, %v259
  %v297 = vadd.f32 %v241, %v264
  %v298 = vadd.f32 %v242, %v269
  %v299 = vadd.f32 %v243, %v274
  %v300 = vadd.f32 %v244, %v279
  %v301 = vadd.f32 %v245, %v284
  %v302 = vadd.f32 %v246, %v289
  %v303 = vadd.f32 %v247, %v294
  %v304 = vld [vmem:[%s7] sm:$0xff]
  %v305 = vld [vmem:[%s7 + $0x8] sm:$0xff]
  %v306 = vld [vmem:[%s7 + $0x10] sm:$0xff]
  %v307 = vld [vmem:[%s7 + $0x18] sm:$0xff]
  %v308 = vld [vmem:[%s8] sm:$0x1]
  %v310 = vperm.slane %v308, 0
  %v313 = vsel %vm48, %v296, 0
  %v316 = vsel %vm48, %v297, 0
  %v319 = vsel %vm48, %v298, 0
  %v322 = vsel %vm48, %v299, 0
  %v325 = vsel %vm48, %v300, 0
  %v328 = vsel %vm48, %v301, 0
  %v331 = vsel %vm48, %v302, 0
  %v334 = vsel %vm48, %v303, 0
  %336 = vmatpush.msra.mxu0 0.0
  %337 = vmatpush.msra.mxu0 0.0
  %338 = vmatpush.msra.mxu0 0.0
  %339 = vmatpush.msra.mxu0 0.0
  %340 = vmatpush.msra.mxu0 0.0
  %341 = vmatpush.msra.mxu0 0.0
  %342 = vmatpush.msra.mxu0 0.0
  %343 = vmatpush.msra.mxu0 0.0
  %344 = vmatpush.msra.mxu0 0.0
  %345 = vmatpush.msra.mxu0 0.0
  %346 = vmatpush.msra.mxu0 0.0
  %347 = vmatpush.msra.mxu0 0.0
  %348 = vmatpush.msra.mxu0 %v307
  %349 = vmatpush.msra.mxu0 %v306
  %350 = vmatpush.msra.mxu0 %v305
  %351 = vmatpush.msra.mxu0 %v304
  %352 = vmatmul.f32.gmra.mxu0 %v313
  %v353 = vpop.f32.mrf.mxu0
  %v354 = vadd.f32 %v310, %v353
  %355 = vmatmul.f32.gmra.mxu0 %v316
  %v356 = vpop.f32.mrf.mxu0
  %v357 = vadd.f32 %v310, %v356
  %358 = vmatmul.f32.gmra.mxu0 %v319
  %v359 = vpop.f32.mrf.mxu0
  %v360 = vadd.f32 %v310, %v359
  %361 = vmatmul.f32.gmra.mxu0 %v322
  %v362 = vpop.f32.mrf.mxu0
  %v363 = vadd.f32 %v310, %v362
  %364 = vmatmul.f32.gmra.mxu0 %v325
  %v365 = vpop.f32.mrf.mxu0
  %v366 = vadd.f32 %v310, %v365
  %367 = vmatmul.f32.gmra.mxu0 %v328
  %v368 = vpop.f32.mrf.mxu0
  %v369 = vadd.f32 %v310, %v368
  %370 = vmatmul.f32.gmra.mxu0 %v331
  %v371 = vpop.f32.mrf.mxu0
  %v372 = vadd.f32 %v310, %v371
  %373 = vmatmul.f32.gmra.mxu0 %v334
  %v374 = vpop.f32.mrf.mxu0
  %v375 = vadd.f32 %v310, %v374
  %376 = vdwg.mxu0
  %vm377 = vcmask 64512
  %378 = vst.msk [vmem:[%s9] sm:$0xff] %vm377, %v354
  %379 = vst.msk [vmem:[%s9 + $0x8] sm:$0xff] %vm377, %v357
  %380 = vst.msk [vmem:[%s9 + $0x10] sm:$0xff] %vm377, %v360
  %381 = vst.msk [vmem:[%s9 + $0x18] sm:$0xff] %vm377, %v363
  %382 = vst.msk [vmem:[%s9 + $0x20] sm:$0xff] %vm377, %v366
  %383 = vst.msk [vmem:[%s9 + $0x28] sm:$0xff] %vm377, %v369
  %384 = vst.msk [vmem:[%s9 + $0x30] sm:$0xff] %vm377, %v372
  %385 = vst.msk [vmem:[%s9 + $0x38] sm:$0xff] %vm377, %v375
  // Predicated region
  $region38: #{audio_feature_forward.2} parent=0 // pred_check
    _
  $region39: #{audio_feature_forward.2} parent=0 // pred_check_branch
    %387 = sbr.rel (0) target = $region41
  $region40: #{audio_feature_forward.2} parent=0 // pred_region
    _
  $region41: #{audio_feature_forward.2} parent=0 // pred_fallthru
    _
  // Predicated region
  $region42: #{audio_feature_forward.2} parent=0 // pred_check
    _
  $region43: #{audio_feature_forward.2} parent=0 // pred_check_branch
    %389 = sbr.rel (0) target = $region45
  $region44: #{audio_feature_forward.2} parent=0 // pred_region
    _
  $region45: #{audio_feature_forward.2} parent=0 // pred_fallthru
    _

// kernel: audio_feature_forward.3
$region0: #{audio_feature_forward.3}
  #allocation0 [shape = 'u32[]', space=smem, size = 0x4, offset = 0x4, fixed_abs, tag = 'smem constant byte address 0x4 - core index']
  #allocation1 [shape = 'u32[72,128]{1,0:T(1,128)}', space=vmem, size = 0x9000, scoped, tag = 'internal scratch']
  %s0 = inlined_call_operand.vmem [shape: f32[64,8], index: 0, kind: input, shape index: {}]
  %s1 = inlined_call_operand.vmem [shape: f32[8,32], index: 1, kind: input, shape index: {}]
  %s2 = inlined_call_operand.vmem [shape: f32[1,32], index: 2, kind: input, shape index: {}]
  %s3 = inlined_call_operand.vmem [shape: f32[64,1], index: 3, kind: input, shape index: {}]
  %s4 = inlined_call_operand.vmem [shape: f32[64,1], index: 4, kind: input, shape index: {}]
  %s5 = inlined_call_operand.vmem [shape: f32[32,64], index: 5, kind: input, shape index: {}]
  %s6 = inlined_call_operand.vmem [shape: f32[1,64], index: 6, kind: input, shape index: {}]
  %s7 = inlined_call_operand.hbm [shape: f32[64,64], index: 7, kind: output, shape index: {}]
  %s8 = sld [smem:[#allocation0]]
  $region38: #{audio_feature_forward.3} parent=0
    _
  %s10 = ssub.s32 1, %s8
  %s11 = scalar_select 0, %s10, %s8
  $region1: #{audio_feature_forward.3} parent=0
    #allocation2 [shape = 'u8[32768]{0}', space=vmem, size = 0x8000, scoped, tag = 'output window, operand 0, single buffered']
    #allocation3 [shape = 's32[1]{0}', space=sflag, size = 0x4, scoped, tag = 'scoped memory for audio_feature_forward.3']
    %12 = vsyncpa [#allocation3], 0
    // Predicated region
    $region2: #{audio_feature_forward.3} parent=1 // pred_check
      _
    $region3: #{audio_feature_forward.3} parent=1 // pred_check_branch
      %14 = sbr.rel (0) target = $region5
    $region4: #{audio_feature_forward.3} parent=1 // pred_region
      _
    $region5: #{audio_feature_forward.3} parent=1 // pred_fallthru
      _
    // Predicated region
    $region6: #{audio_feature_forward.3} parent=1 // pred_check
      _
    $region7: #{audio_feature_forward.3} parent=1 // pred_check_branch
      %16 = sbr.rel (0) target = $region9
    $region8: #{audio_feature_forward.3} parent=1 // pred_region
      _
    $region9: #{audio_feature_forward.3} parent=1 // pred_fallthru
      _
    // Predicated region
    $region10: #{audio_feature_forward.3} parent=1 // pred_check
      _
    $region11: #{audio_feature_forward.3} parent=1 // pred_check_branch
      %18 = sbr.rel (0) target = $region13
    $region12: #{audio_feature_forward.3} parent=1 // pred_region
      _
    $region13: #{audio_feature_forward.3} parent=1 // pred_fallthru
      _
    // Predicated region
    $region14: #{audio_feature_forward.3} parent=1 // pred_check
      _
    $region15: #{audio_feature_forward.3} parent=1 // pred_check_branch
      %20 = sbr.rel (0) target = $region17
    $region16: #{audio_feature_forward.3} parent=1 // pred_region
      _
    $region17: #{audio_feature_forward.3} parent=1 // pred_fallthru
      _
    // Predicated region
    $region18: #{audio_feature_forward.3} parent=1 // pred_check
      _
    $region19: #{audio_feature_forward.3} parent=1 // pred_check_branch
      %22 = sbr.rel (0) target = $region21
    $region20: #{audio_feature_forward.3} parent=1 // pred_region
      _
    $region21: #{audio_feature_forward.3} parent=1 // pred_fallthru
      _
    // Predicated region
    $region22: #{audio_feature_forward.3} parent=1 // pred_check
      _
    $region23: #{audio_feature_forward.3} parent=1 // pred_check_branch
      %24 = sbr.rel (0) target = $region25
    $region24: #{audio_feature_forward.3} parent=1 // pred_region
      _
    $region25: #{audio_feature_forward.3} parent=1 // pred_fallthru
      _
    // Predicated region
    $region26: #{audio_feature_forward.3} parent=1 // pred_check
      _
    $region27: #{audio_feature_forward.3} parent=1 // pred_check_branch
      %26 = sbr.rel (0) target = $region29
    $region28: #{audio_feature_forward.3} parent=1 // pred_region
      _
    $region29: #{audio_feature_forward.3} parent=1 // pred_fallthru
      _
    %v27 = vld [vmem:[%s0] sm:$0xff]
    %v28 = vld [vmem:[%s0 + $0x8] sm:$0xff]
    %v29 = vld [vmem:[%s0 + $0x10] sm:$0xff]
    %v30 = vld [vmem:[%s0 + $0x18] sm:$0xff]
    %v31 = vld [vmem:[%s0 + $0x20] sm:$0xff]
    %v32 = vld [vmem:[%s0 + $0x28] sm:$0xff]
    %v33 = vld [vmem:[%s0 + $0x30] sm:$0xff]
    %v34 = vld [vmem:[%s0 + $0x38] sm:$0xff]
    %v35 = vld [vmem:[%s1] sm:$0xff]
    %v36 = vld [vmem:[%s2] sm:$0x1]
    %v38 = vperm.slane %v36, 0
    %vm40 = vcmask 64512
    %v42 = vsel %vm40, %v27, 0
    %v45 = vsel %vm40, %v28, 0
    %v48 = vsel %vm40, %v29, 0
    %v51 = vsel %vm40, %v30, 0
    %v54 = vsel %vm40, %v31, 0
    %v57 = vsel %vm40, %v32, 0
    %v60 = vsel %vm40, %v33, 0
    %v63 = vsel %vm40, %v34, 0
    %65 = vmatpush.msra.mxu0 0.0
    %66 = vmatpush.msra.mxu0 0.0
    %67 = vmatpush.msra.mxu0 0.0
    %68 = vmatpush.msra.mxu0 0.0
    %69 = vmatpush.msra.mxu0 0.0
    %70 = vmatpush.msra.mxu0 0.0
    %71 = vmatpush.msra.mxu0 0.0
    %72 = vmatpush.msra.mxu0 0.0
    %73 = vmatpush.msra.mxu0 0.0
    %74 = vmatpush.msra.mxu0 0.0
    %75 = vmatpush.msra.mxu0 0.0
    %76 = vmatpush.msra.mxu0 0.0
    %77 = vmatpush.msra.mxu0 0.0
    %78 = vmatpush.msra.mxu0 0.0
    %79 = vmatpush.msra.mxu0 0.0
    %80 = vmatpush.msra.mxu0 %v35
    %81 = vmatmul.f32.gmra.mxu0 %v42
    %v82 = vpop.f32.mrf.mxu0
    %v83 = vadd.f32 %v38, %v82
    %84 = vmatmul.f32.gmra.mxu0 %v45
    %v85 = vpop.f32.mrf.mxu0
    %v86 = vadd.f32 %v38, %v85
    %87 = vmatmul.f32.gmra.mxu0 %v48
    %v88 = vpop.f32.mrf.mxu0
    %v89 = vadd.f32 %v38, %v88
    %90 = vmatmul.f32.gmra.mxu0 %v51
    %v91 = vpop.f32.mrf.mxu0
    %v92 = vadd.f32 %v38, %v91
    %93 = vmatmul.f32.gmra.mxu0 %v54
    %v94 = vpop.f32.mrf.mxu0
    %v95 = vadd.f32 %v38, %v94
    %96 = vmatmul.f32.gmra.mxu0 %v57
    %v97 = vpop.f32.mrf.mxu0
    %v98 = vadd.f32 %v38, %v97
    %99 = vmatmul.f32.gmra.mxu0 %v60
    %v100 = vpop.f32.mrf.mxu0
    %v101 = vadd.f32 %v38, %v100
    %102 = vmatmul.f32.gmra.mxu0 %v63
    %v103 = vpop.f32.mrf.mxu0
    %v104 = vadd.f32 %v38, %v103
    %105 = vdwg.mxu0
    %v106 = vld [vmem:[%s3] sm:$0xff]
    %v107 = vld [vmem:[%s3 + $0x8] sm:$0xff]
    %v108 = vld [vmem:[%s3 + $0x10] sm:$0xff]
    %v109 = vld [vmem:[%s3 + $0x18] sm:$0xff]
    %v110 = vld [vmem:[%s3 + $0x20] sm:$0xff]
    %v111 = vld [vmem:[%s3 + $0x28] sm:$0xff]
    %v112 = vld [vmem:[%s3 + $0x30] sm:$0xff]
    %v113 = vld [vmem:[%s3 + $0x38] sm:$0xff]
    %115 = vset.pattern.permute.xlu0 0
    %116 = vperm.xlu0 %115, %v106
    %v117 = vpop.permute.xlu0 %116
    %120 = vset.pattern.permute.xlu0 0
    %121 = vperm.xlu0 %120, %v107
    %v122 = vpop.permute.xlu0 %121
    %125 = vset.pattern.permute.xlu0 0
    %126 = vperm.xlu0 %125, %v108
    %v127 = vpop.permute.xlu0 %126
    %130 = vset.pattern.permute.xlu0 0
    %131 = vperm.xlu0 %130, %v109
    %v132 = vpop.permute.xlu0 %131
    %135 = vset.pattern.permute.xlu0 0
    %136 = vperm.xlu0 %135, %v110
    %v137 = vpop.permute.xlu0 %136
    %140 = vset.pattern.permute.xlu0 0
    %141 = vperm.xlu0 %140, %v111
    %v142 = vpop.permute.xlu0 %141
    %145 = vset.pattern.permute.xlu0 0
    %146 = vperm.xlu0 %145, %v112
    %v147 = vpop.permute.xlu0 %146
    %150 = vset.pattern.permute.xlu0 0
    %151 = vperm.xlu0 %150, %v113
    %v152 = vpop.permute.xlu0 %151
    %v154 = vmul.f32 %v83, %v117
    %v155 = vmul.f32 %v86, %v122
    %v156 = vmul.f32 %v89, %v127
    %v157 = vmul.f32 %v92, %v132
    %v158 = vmul.f32 %v95, %v137
    %v159 = vmul.f32 %v98, %v142
    %v160 = vmul.f32 %v101, %v147
    %v161 = vmul.f32 %v104, %v152
    %v162 = vld [vmem:[%s4] sm:$0xff]
    %v163 = vld [vmem:[%s4 + $0x8] sm:$0xff]
    %v164 = vld [vmem:[%s4 + $0x10] sm:$0xff]
    %v165 = vld [vmem:[%s4 + $0x18] sm:$0xff]
    %v166 = vld [vmem:[%s4 + $0x20] sm:$0xff]
    %v167 = vld [vmem:[%s4 + $0x28] sm:$0xff]
    %v168 = vld [vmem:[%s4 + $0x30] sm:$0xff]
    %v169 = vld [vmem:[%s4 + $0x38] sm:$0xff]
    %171 = vset.pattern.permute.xlu0 0
    %172 = vperm.xlu0 %171, %v162
    %v173 = vpop.permute.xlu0 %172
    %176 = vset.pattern.permute.xlu0 0
    %177 = vperm.xlu0 %176, %v163
    %v178 = vpop.permute.xlu0 %177
    %181 = vset.pattern.permute.xlu0 0
    %182 = vperm.xlu0 %181, %v164
    %v183 = vpop.permute.xlu0 %182
    %186 = vset.pattern.permute.xlu0 0
    %187 = vperm.xlu0 %186, %v165
    %v188 = vpop.permute.xlu0 %187
    %191 = vset.pattern.permute.xlu0 0
    %192 = vperm.xlu0 %191, %v166
    %v193 = vpop.permute.xlu0 %192
    %196 = vset.pattern.permute.xlu0 0
    %197 = vperm.xlu0 %196, %v167
    %v198 = vpop.permute.xlu0 %197
    %201 = vset.pattern.permute.xlu0 0
    %202 = vperm.xlu0 %201, %v168
    %v203 = vpop.permute.xlu0 %202
    %206 = vset.pattern.permute.xlu0 0
    %207 = vperm.xlu0 %206, %v169
    %v208 = vpop.permute.xlu0 %207
    %v210 = vadd.f32 %v154, %v173
    %v211 = vadd.f32 %v155, %v178
    %v212 = vadd.f32 %v156, %v183
    %v213 = vadd.f32 %v157, %v188
    %v214 = vadd.f32 %v158, %v193
    %v215 = vadd.f32 %v159, %v198
    %v216 = vadd.f32 %v160, %v203
    %v217 = vadd.f32 %v161, %v208
    %v218 = vld [vmem:[%s5] sm:$0xff]
    %v219 = vld [vmem:[%s5 + $0x8] sm:$0xff]
    %v220 = vld [vmem:[%s5 + $0x10] sm:$0xff]
    %v221 = vld [vmem:[%s5 + $0x18] sm:$0xff]
    %v222 = vld [vmem:[%s6] sm:$0x1]
    %v224 = vperm.slane %v222, 0
    %vm226 = vcmask 261120
    %v228 = vsel %vm226, %v210, 0
    %v231 = vsel %vm226, %v211, 0
    %v234 = vsel %vm226, %v212, 0
    %v237 = vsel %vm226, %v213, 0
    %v240 = vsel %vm226, %v214, 0
    %v243 = vsel %vm226, %v215, 0
    %v246 = vsel %vm226, %v216, 0
    %v249 = vsel %vm226, %v217, 0
    %251 = vmatpush.msra.mxu0 0.0
    %252 = vmatpush.msra.mxu0 0.0
    %253 = vmatpush.msra.mxu0 0.0
    %254 = vmatpush.msra.mxu0 0.0
    %255 = vmatpush.msra.mxu0 0.0
    %256 = vmatpush.msra.mxu0 0.0
    %257 = vmatpush.msra.mxu0 0.0
    %258 = vmatpush.msra.mxu0 0.0
    %259 = vmatpush.msra.mxu0 0.0
    %260 = vmatpush.msra.mxu0 0.0
    %261 = vmatpush.msra.mxu0 0.0
    %262 = vmatpush.msra.mxu0 0.0
    %263 = vmatpush.msra.mxu0 %v221
    %264 = vmatpush.msra.mxu0 %v220
    %265 = vmatpush.msra.mxu0 %v219
    %266 = vmatpush.msra.mxu0 %v218
    %267 = vmatmul.f32.gmra.mxu0 %v228
    %v268 = vpop.f32.mrf.mxu0
    %v269 = vadd.f32 %v224, %v268
    %270 = vmatmul.f32.gmra.mxu0 %v231
    %v271 = vpop.f32.mrf.mxu0
    %v272 = vadd.f32 %v224, %v271
    %273 = vmatmul.f32.gmra.mxu0 %v234
    %v274 = vpop.f32.mrf.mxu0
    %v275 = vadd.f32 %v224, %v274
    %276 = vmatmul.f32.gmra.mxu0 %v237
    %v277 = vpop.f32.mrf.mxu0
    %v278 = vadd.f32 %v224, %v277
    %279 = vmatmul.f32.gmra.mxu0 %v240
    %v280 = vpop.f32.mrf.mxu0
    %v281 = vadd.f32 %v224, %v280
    %282 = vmatmul.f32.gmra.mxu0 %v243
    %v283 = vpop.f32.mrf.mxu0
    %v284 = vadd.f32 %v224, %v283
    %285 = vmatmul.f32.gmra.mxu0 %v246
    %v286 = vpop.f32.mrf.mxu0
    %v287 = vadd.f32 %v224, %v286
    %288 = vmatmul.f32.gmra.mxu0 %v249
    %v289 = vpop.f32.mrf.mxu0
    %v290 = vadd.f32 %v224, %v289
    %291 = vdwg.mxu0
    %vm292 = vcmask 523264
    %293 = vst.msk [vmem:[#allocation2] sm:$0xff] %vm292, %v269
    %294 = vst.msk [vmem:[#allocation2 + $0x8] sm:$0xff] %vm292, %v272
    %295 = vst.msk [vmem:[#allocation2 + $0x10] sm:$0xff] %vm292, %v275
    %296 = vst.msk [vmem:[#allocation2 + $0x18] sm:$0xff] %vm292, %v278
    %297 = vst.msk [vmem:[#allocation2 + $0x20] sm:$0xff] %vm292, %v281
    %298 = vst.msk [vmem:[#allocation2 + $0x28] sm:$0xff] %vm292, %v284
    %299 = vst.msk [vmem:[#allocation2 + $0x30] sm:$0xff] %vm292, %v287
    %300 = vst.msk [vmem:[#allocation2 + $0x38] sm:$0xff] %vm292, %v290
    // Predicated region
    $region30: #{audio_feature_forward.3} parent=1 // pred_check
      _
    $region31: #{audio_feature_forward.3} parent=1 // pred_check_branch
      %302 = sbr.rel (0) target = $region33
    $region32: #{audio_feature_forward.3} parent=1 // pred_region
      %304 = vsyncadd [#allocation3], 0
      %s305 = sshll.u32 [#allocation2], 4
      %s306 = int_to_ptr.vmem [resolvable:$true] %s305
      %s307 = sshll.u32 %s7, 4
      %s308 = int_to_ptr.hbm [resolvable:$true] %s307
      %313 = dma.vmem_to_hbm [thread:$0]  %s306, 1024, %s308, [#allocation3], 128, 128, 8
    $region33: #{audio_feature_forward.3} parent=1 // pred_fallthru
      _
    // Predicated region
    $region34: #{audio_feature_forward.3} parent=1 // pred_check
      _
    $region35: #{audio_feature_forward.3} parent=1 // pred_check_branch
      %315 = sbr.rel (0) target = $region37
    $region36: #{audio_feature_forward.3} parent=1 // pred_region
      %317 = dma.done [#allocation3], 1024
    $region37: #{audio_feature_forward.3} parent=1 // pred_fallthru
      _
    %318 = vsyncpa [#allocation3], 1

</llo_original>
